<compile_context>
chip_gen: v7x
topology: tpu7x:2x2x1
jax: 0.10.0
libtpu: 0.0.40
codegen_flags: <defaults>
</compile_context>

<pallas_src>
import functools

import jax
import jax.numpy as jnp
from jax.experimental import pallas as pl
from jax.experimental.pallas import tpu as pltpu


LANES = 128
SUBLANES = 8
MAX_BLOCK_ROWS = 8192            # hard cap: (8192,128) f32 = 4 MiB per stream/buffer
VMEM_INPUT_BUDGET = 24 << 20     # double-buffered input tiles must fit in this
VMEM_LIMIT_BYTES = 32 << 20      # <= scoped/physical VMEM on v5e/v6e/v7x


def _mse_weighed_kernel(x_ref, t_ref, s_ref, o_ref, *,
                        inst_factor, rows, block_rows, tiles_per_core, needs_mask):
    i = pl.program_id(1)   # row-tile axis ("arbitrary", accumulating)

    @pl.when(i == 0)
    def _init():
        o_ref[...] = jnp.zeros_like(o_ref)

    # Widen in-vreg (inputs may be bf16); compute elementwise weighed SE.
    x = x_ref[...].astype(jnp.float32)
    t = t_ref[...].astype(jnp.float32)
    s = s_ref[...].astype(jnp.float32)

    diff = x - t
    contrib = (diff * diff) / (s * s + inst_factor)

    if needs_mask:
        # Zero rows past the end of the data (ragged last tile and duplicated
        # clamped tiles when the tile count does not split evenly across
        # shards).  Skipped entirely (statically) when the split is even.
        c = pl.program_id(0)
        global_tile = c * tiles_per_core + i
        valid_rows = rows - global_tile * block_rows          # traced scalar
        row_idx = jax.lax.broadcasted_iota(jnp.int32, (block_rows, LANES), 0)
        contrib = jnp.where(row_idx < valid_rows, contrib, 0.0)

    # Fold groups of 8 rows onto the resident (8,128) accumulator: pure VPU
    # adds across vregs, no per-step cross-lane reduce, no scalar chain.
    folded = contrib.reshape(block_rows // SUBLANES, SUBLANES, LANES).sum(axis=0)
    o_ref[...] += folded[None, :, :]


def mse_weighed(input_arr, target_arr, sigma_arr, inst_factor,
                num_cores=2, max_block_rows=None):
    """Pallas implementation of MSEWeighed.forward. Returns a float32 scalar."""
    x = jnp.ravel(input_arr)
    t = jnp.ravel(target_arr)
    s = jnp.ravel(sigma_arr)
    n = x.shape[0]

    # Pad only the ragged tail up to a multiple of 8*128 (at most 1023 elems,
    # zero-copy when already aligned). Pad sigma with 1.0 so padded slots
    # contribute exactly 0 = (0-0)^2 / (1 + inst_factor).
    chunk = SUBLANES * LANES
    pad = (-n) % chunk
    if pad:
        x = jnp.concatenate([x, jnp.zeros((pad,), x.dtype)])
        t = jnp.concatenate([t, jnp.zeros((pad,), t.dtype)])
        s = jnp.concatenate([s, jnp.ones((pad,), s.dtype)])

    rows = (n + pad) // LANES
    x2 = x.reshape(rows, LANES)
    t2 = t.reshape(rows, LANES)
    s2 = s.reshape(rows, LANES)

    # Pick the biggest row tile that keeps double-buffered inputs under budget.
    per_row_bytes = LANES * (x2.dtype.itemsize + t2.dtype.itemsize + s2.dtype.itemsize)
    budget_rows = (VMEM_INPUT_BUDGET // (2 * per_row_bytes)) // SUBLANES * SUBLANES
    cap = max_block_rows if max_block_rows is not None else MAX_BLOCK_ROWS
    block_rows = max(SUBLANES, min(rows, budget_rows, cap))   # multiple of 8

    num_tiles = pl.cdiv(rows, block_rows)
    num_cores = max(1, min(num_cores, num_tiles))
    tiles_per_core = pl.cdiv(num_tiles, num_cores)

    # Static: do we need the clamp + in-kernel row mask at all?
    needs_mask = (rows % block_rows != 0) or (num_tiles % num_cores != 0)

    kernel = functools.partial(
        _mse_weighed_kernel,
        inst_factor=float(inst_factor),
        rows=rows,
        block_rows=block_rows,
        tiles_per_core=tiles_per_core,
        needs_mask=needs_mask,
    )

    if needs_mask:
        def in_map(c, i):
            # Clamp so a shard's overflow tiles re-read the last valid tile;
            # their contribution is zeroed by the in-kernel row mask.
            return (jnp.minimum(c * tiles_per_core + i, num_tiles - 1), 0)
    else:
        def in_map(c, i):
            return (c * tiles_per_core + i, 0)

    tile_spec = pl.BlockSpec((block_rows, LANES), in_map)
    out_spec = pl.BlockSpec((1, SUBLANES, LANES), lambda c, i: (c, 0, 0))

    partial_sums = pl.pallas_call(
        kernel,
        out_shape=jax.ShapeDtypeStruct((num_cores, SUBLANES, LANES), jnp.float32),
        grid_spec=pltpu.PrefetchScalarGridSpec(
            num_scalar_prefetch=0,
            grid=(num_cores, tiles_per_core),
            in_specs=[tile_spec, tile_spec, tile_spec],
            out_specs=out_spec,
        ),
        compiler_params=pltpu.CompilerParams(
            dimension_semantics=("parallel", "arbitrary"),
            vmem_limit_bytes=VMEM_LIMIT_BYTES,
        ),
    )(x2, t2, s2)

    # Single tiny cross-lane reduction + mean normalization in the wrapper.
    return jnp.sum(partial_sums) / jnp.float32(n)


def _ref(inp, tgt, sig, f):
    inp = inp.astype(jnp.float32)
    tgt = tgt.astype(jnp.float32)
    sig = sig.astype(jnp.float32)
    return jnp.mean((inp - tgt) ** 2 / (sig ** 2 + f))


if __name__ == "__main__":
    key = jax.random.PRNGKey(0)
    keys = jax.random.split(key, 12)
    inst_factor = 0.1

    # Test 1: lane/sublane-aligned shape (zero-copy, no-mask fast path).
    shape = (2, 4, 16, 16)
    inp = jax.random.normal(keys[0], shape, jnp.float32)
    tgt = jax.random.normal(keys[1], shape, jnp.float32)
    sig = jax.random.uniform(keys[2], shape, jnp.float32, minval=0.5, maxval=1.5)
    out = jax.block_until_ready(mse_weighed(inp, tgt, sig, inst_factor))
    assert jnp.allclose(out, _ref(inp, tgt, sig, inst_factor), rtol=1e-5, atol=1e-6)

    # Test 2: ragged element count (exercises tail padding).
    shape2 = (5, 77)
    inp2 = jax.random.normal(keys[3], shape2, jnp.float32)
    tgt2 = jax.random.normal(keys[4], shape2, jnp.float32)
    sig2 = jax.random.uniform(keys[5], shape2, jnp.float32, minval=0.5, maxval=1.5)
    out2 = jax.block_until_ready(mse_weighed(inp2, tgt2, sig2, inst_factor))
    assert jnp.allclose(out2, _ref(inp2, tgt2, sig2, inst_factor), rtol=1e-5, atol=1e-6)

    # Test 3: force multiple tiles + uneven shard split (clamp + row mask path).
    shape3 = (40, 130)
    inp3 = jax.random.normal(keys[6], shape3, jnp.float32)
    tgt3 = jax.random.normal(keys[7], shape3, jnp.float32)
    sig3 = jax.random.uniform(keys[8], shape3, jnp.float32, minval=0.5, maxval=1.5)
    out3 = jax.block_until_ready(
        mse_weighed(inp3, tgt3, sig3, inst_factor, max_block_rows=16))
    assert jnp.allclose(out3, _ref(inp3, tgt3, sig3, inst_factor), rtol=1e-5, atol=1e-6)

    # Test 4: ragged boundary block (rows not a multiple of block_rows).
    shape4 = (33, 100)
    inp4 = jax.random.normal(keys[9], shape4, jnp.float32)
    tgt4 = jax.random.normal(keys[10], shape4, jnp.float32)
    sig4 = jax.random.uniform(keys[11], shape4, jnp.float32, minval=0.5, maxval=1.5)
    out4 = jax.block_until_ready(
        mse_weighed(inp4, tgt4, sig4, inst_factor, max_block_rows=24))
    assert jnp.allclose(out4, _ref(inp4, tgt4, sig4, inst_factor), rtol=1e-5, atol=1e-6)

    # Test 5: bf16 inputs (in-vreg widening path, bf16-only HBM traffic).
    inp5 = inp.astype(jnp.bfloat16)
    tgt5 = tgt.astype(jnp.bfloat16)
    sig5 = sig.astype(jnp.bfloat16)
    out5 = jax.block_until_ready(mse_weighed(inp5, tgt5, sig5, inst_factor))
    assert jnp.allclose(out5, _ref(inp5, tgt5, sig5, inst_factor), rtol=1e-4, atol=1e-5)

    print("KERNEL_OK")
</pallas_src>

<mosaic_0001>
module attributes {stable_mosaic.version = 11 : i64} {
  func.func @_mse_weighed_kernel(%arg0: i32, %arg1: i32, %arg2: memref<16x128xf32, #tpu.memory_space<vmem>>, %arg3: memref<16x128xf32, #tpu.memory_space<vmem>>, %arg4: memref<16x128xf32, #tpu.memory_space<vmem>>, %arg5: memref<1x8x128xf32, #tpu.memory_space<vmem>>) attributes {dimension_semantics = [#tpu.dimension_semantics<parallel>, #tpu.dimension_semantics<arbitrary>], iteration_bounds = array<i64: 1, 1>, scalar_prefetch = 0 : i64, scratch_operands = 0 : i64, tpu.core_type = #tpu.core_type<tc>, window_params = [{transform_indices = @transform_0, window_bounds = array<i64: 16, 128>}, {transform_indices = @transform_1, window_bounds = array<i64: 16, 128>}, {transform_indices = @transform_2, window_bounds = array<i64: 16, 128>}, {transform_indices = @transform_3, window_bounds = array<i64: 1, 8, 128>}]} {
    %c0_i32 = arith.constant 0 : i32
    %0 = arith.cmpi eq, %arg1, %c0_i32 : i32
    %1 = arith.extui %0 : i1 to i32
    %c0_i32_0 = arith.constant 0 : i32
    %2 = arith.cmpi ne, %1, %c0_i32_0 : i32
    scf.if %2 {
      %cst_13 = arith.constant 0.000000e+00 : f32
      %18 = vector.broadcast %cst_13 : f32 to vector<1x8x128xf32>
      %c0_14 = arith.constant 0 : index
      %c0_15 = arith.constant 0 : index
      %c0_16 = arith.constant 0 : index
      %19 = vector.load %arg5[%c0_14, %c0_15, %c0_16] : memref<1x8x128xf32, #tpu.memory_space<vmem>>, vector<1x8x128xf32>
      tpu.vector_store %arg5[%c0_14, %c0_15, %c0_16], %18 {strides = array<i32>} : memref<1x8x128xf32, #tpu.memory_space<vmem>>, vector<1x8x128xf32>,
    } else {
    }
    %c0 = arith.constant 0 : index
    %c0_1 = arith.constant 0 : index
    %3 = vector.load %arg2[%c0, %c0_1] : memref<16x128xf32, #tpu.memory_space<vmem>>, vector<16x128xf32>
    %c0_2 = arith.constant 0 : index
    %c0_3 = arith.constant 0 : index
    %4 = vector.load %arg3[%c0_2, %c0_3] : memref<16x128xf32, #tpu.memory_space<vmem>>, vector<16x128xf32>
    %c0_4 = arith.constant 0 : index
    %c0_5 = arith.constant 0 : index
    %5 = vector.load %arg4[%c0_4, %c0_5] : memref<16x128xf32, #tpu.memory_space<vmem>>, vector<16x128xf32>
    %6 = arith.subf %3, %4 : vector<16x128xf32>
    %7 = arith.mulf %6, %6 : vector<16x128xf32>
    %8 = arith.mulf %5, %5 : vector<16x128xf32>
    %cst = arith.constant 1.000000e-01 : f32
    %9 = vector.broadcast %cst : f32 to vector<16x128xf32>
    %10 = arith.addf %8, %9 : vector<16x128xf32>
    %11 = arith.divf %7, %10 : vector<16x128xf32>
    %12 = vector.shape_cast %11 : vector<16x128xf32> to vector<2x8x128xf32>
    %cst_6 = arith.constant dense<0.000000e+00> : vector<8x128xf32>
    %13 = vector.multi_reduction <add>, %12, %cst_6 [0] : vector<2x8x128xf32> to vector<8x128xf32>
    %c0_7 = arith.constant 0 : index
    %c0_8 = arith.constant 0 : index
    %c0_9 = arith.constant 0 : index
    %14 = vector.load %arg5[%c0_7, %c0_8, %c0_9] : memref<1x8x128xf32, #tpu.memory_space<vmem>>, vector<1x8x128xf32>
    %15 = vector.shape_cast %13 : vector<8x128xf32> to vector<1x8x128xf32>
    %16 = arith.addf %14, %15 : vector<1x8x128xf32>
    %c0_10 = arith.constant 0 : index
    %c0_11 = arith.constant 0 : index
    %c0_12 = arith.constant 0 : index
    %17 = vector.load %arg5[%c0_10, %c0_11, %c0_12] : memref<1x8x128xf32, #tpu.memory_space<vmem>>, vector<1x8x128xf32>
    tpu.vector_store %arg5[%c0_10, %c0_11, %c0_12], %16 {strides = array<i32>} : memref<1x8x128xf32, #tpu.memory_space<vmem>>, vector<1x8x128xf32>,
    return
  }
  func.func @transform_0(%arg0: i32, %arg1: i32) -> (i32, i32) {
    %c1_i32 = arith.constant 1 : i32
    %0 = arith.muli %arg0, %c1_i32 : i32
    %1 = arith.addi %0, %arg1 : i32
    %c0_i32 = arith.constant 0 : i32
    %c0_i32_0 = arith.constant 0 : i32
    return %1, %c0_i32 : i32, i32
  }
  func.func @transform_1(%arg0: i32, %arg1: i32) -> (i32, i32) {
    %c1_i32 = arith.constant 1 : i32
    %0 = arith.muli %arg0, %c1_i32 : i32
    %1 = arith.addi %0, %arg1 : i32
    %c0_i32 = arith.constant 0 : i32
    %c0_i32_0 = arith.constant 0 : i32
    return %1, %c0_i32 : i32, i32
  }
  func.func @transform_2(%arg0: i32, %arg1: i32) -> (i32, i32) {
    %c1_i32 = arith.constant 1 : i32
    %0 = arith.muli %arg0, %c1_i32 : i32
    %1 = arith.addi %0, %arg1 : i32
    %c0_i32 = arith.constant 0 : i32
    %c0_i32_0 = arith.constant 0 : i32
    return %1, %c0_i32 : i32, i32
  }
  func.func @transform_3(%arg0: i32, %arg1: i32) -> (i32, i32, i32) {
    %c0_i32 = arith.constant 0 : i32
    %c0_i32_0 = arith.constant 0 : i32
    %c0_i32_1 = arith.constant 0 : i32
    return %arg0, %c0_i32, %c0_i32_0 : i32, i32, i32
  }
}

</mosaic_0001>

<llo_original>
// kernel: tpu_custom_call.1
$region0: #{tpu_custom_call.1}
  #allocation0 [shape = 'u32[]', space=smem, size = 0x4, offset = 0x4, fixed_abs, tag = 'smem constant byte address 0x4 - core index']
  #allocation1 [shape = 'u32[144,128]{1,0:T(1,128)}', space=vmem, size = 0x12000, scoped, tag = 'internal scratch']
  %s0 = inlined_call_operand.hbm [shape: f32[16,128], index: 0, kind: input, shape index: {}]
  %s1 = inlined_call_operand.hbm [shape: f32[16,128], index: 1, kind: input, shape index: {}]
  %s2 = inlined_call_operand.hbm [shape: f32[16,128], index: 2, kind: input, shape index: {}]
  %s3 = inlined_call_operand.hbm [shape: f32[1,8,128], index: 3, kind: output, shape index: {}]
  %s4 = sld [smem:[#allocation0]]
  $region38: #{tpu_custom_call.1} parent=0
    _
  %s6 = ssub.s32 1, %s4
  %s7 = scalar_select 0, %s6, %s4
  $region1: #{tpu_custom_call.1} parent=0
    #allocation2 [shape = 'u8[8192]{0}', space=vmem, size = 0x2000, scoped, tag = 'input window, operand 0, single buffered']
    #allocation3 [shape = 's32[1]{0}', space=sflag, size = 0x4, scoped, tag = 'scoped memory for tpu_custom_call.1']
    #allocation4 [shape = 's32[1]{0}', space=sflag, size = 0x4, scoped, tag = 'scoped memory for tpu_custom_call.1']
    #allocation5 [shape = 'u8[8192]{0}', space=vmem, size = 0x2000, scoped, tag = 'input window, operand 1, single buffered']
    #allocation6 [shape = 's32[1]{0}', space=sflag, size = 0x4, scoped, tag = 'scoped memory for tpu_custom_call.1']
    #allocation7 [shape = 'u8[8192]{0}', space=vmem, size = 0x2000, scoped, tag = 'input window, operand 2, single buffered']
    #allocation8 [shape = 'u8[4096]{0}', space=vmem, size = 0x1000, scoped, tag = 'output window, operand 0, single buffered']
    %8 = vsyncpa [#allocation3], 0
    %9 = vsyncpa [#allocation6], 0
    %10 = vsyncpa [#allocation4], 0
    // Predicated region
    $region2: #{tpu_custom_call.1} parent=1 // pred_check
      _
    $region3: #{tpu_custom_call.1} parent=1 // pred_check_branch
      %12 = sbr.rel (0) target = $region5
    $region4: #{tpu_custom_call.1} parent=1 // pred_region
      %s13 = sadd.s32 0, 0
      %s14 = smul.u32 2, %s13
      %s16 = ssub.s32 256, 256
      %17 = vsyncadd [#allocation3], %s16
      %s18 = smul.addr %s14, 128
      %s19 = scalar_lea.hbm %s0, %s18
      %s20 = sshll.u32 [#allocation2], 4
      %s21 = int_to_ptr.vmem [resolvable:$true] %s20
      %26 = dma.hbm_to_vmem [thread:$0]  %s19, 256, %s21, [#allocation3], 128, 128, 8
    $region5: #{tpu_custom_call.1} parent=1 // pred_fallthru
      _
    // Predicated region
    $region6: #{tpu_custom_call.1} parent=1 // pred_check
      _
    $region7: #{tpu_custom_call.1} parent=1 // pred_check_branch
      %28 = sbr.rel (0) target = $region9
    $region8: #{tpu_custom_call.1} parent=1 // pred_region
      %s29 = sadd.s32 0, 0
      %s30 = smul.u32 2, %s29
      %s32 = ssub.s32 256, 256
      %33 = vsyncadd [#allocation6], %s32
      %s34 = smul.addr %s30, 128
      %s35 = scalar_lea.hbm %s1, %s34
      %s36 = sshll.u32 [#allocation5], 4
      %s37 = int_to_ptr.vmem [resolvable:$true] %s36
      %42 = dma.hbm_to_vmem [thread:$0]  %s35, 256, %s37, [#allocation6], 128, 128, 8
    $region9: #{tpu_custom_call.1} parent=1 // pred_fallthru
      _
    // Predicated region
    $region10: #{tpu_custom_call.1} parent=1 // pred_check
      _
    $region11: #{tpu_custom_call.1} parent=1 // pred_check_branch
      %44 = sbr.rel (0) target = $region13
    $region12: #{tpu_custom_call.1} parent=1 // pred_region
      %s45 = sadd.s32 0, 0
      %s46 = smul.u32 2, %s45
      %s48 = ssub.s32 256, 256
      %49 = vsyncadd [#allocation6], %s48
      %s50 = smul.addr %s46, 128
      %s51 = scalar_lea.hbm %s2, %s50
      %s52 = sshll.u32 [#allocation7], 4
      %s53 = int_to_ptr.vmem [resolvable:$true] %s52
      %58 = dma.hbm_to_vmem [thread:$0]  %s51, 256, %s53, [#allocation6], 128, 128, 8
    $region13: #{tpu_custom_call.1} parent=1 // pred_fallthru
      _
    // Predicated region
    $region14: #{tpu_custom_call.1} parent=1 // pred_check
      _
    $region15: #{tpu_custom_call.1} parent=1 // pred_check_branch
      %60 = sbr.rel (0) target = $region17
    $region16: #{tpu_custom_call.1} parent=1 // pred_region
      %61 = dma.done [#allocation3], 256
    $region17: #{tpu_custom_call.1} parent=1 // pred_fallthru
      _
    // Predicated region
    $region18: #{tpu_custom_call.1} parent=1 // pred_check
      _
    $region19: #{tpu_custom_call.1} parent=1 // pred_check_branch
      %63 = sbr.rel (0) target = $region21
    $region20: #{tpu_custom_call.1} parent=1 // pred_region
      %64 = dma.done [#allocation6], 256
    $region21: #{tpu_custom_call.1} parent=1 // pred_fallthru
      _
    // Predicated region
    $region22: #{tpu_custom_call.1} parent=1 // pred_check
      _
    $region23: #{tpu_custom_call.1} parent=1 // pred_check_branch
      %66 = sbr.rel (0) target = $region25
    $region24: #{tpu_custom_call.1} parent=1 // pred_region
      %67 = dma.done [#allocation6], 256
    $region25: #{tpu_custom_call.1} parent=1 // pred_fallthru
      _
    %s68 = sadd.s32 0, 0
    %s69 = smul.u32 2, %s68
    %s70 = sadd.s32 0, 0
    %s71 = smul.u32 2, %s70
    %s72 = sadd.s32 0, 0
    %s73 = smul.u32 2, %s72
    %p74 = scmp.eq.s32.totalorder 0, 0
    // Predicated region
    $region26: #{tpu_custom_call.1} parent=1 // pred_check
      %p75 = pneg %p74
    $region27: #{tpu_custom_call.1} parent=1 // pred_check_branch
      %77 = sbr.rel (%p75) target = $region29
    $region28: #{tpu_custom_call.1} parent=1 // pred_region
      %78 = vst [vmem:[#allocation8] sm:$0xff] 0.0
    $region29: #{tpu_custom_call.1} parent=1 // pred_fallthru
      _
    %v79 = vld [vmem:[#allocation2] sm:$0xff]
    %v80 = vld [vmem:[#allocation2 + $0x8] sm:$0xff]
    %v81 = vld [vmem:[#allocation5] sm:$0xff]
    %v82 = vld [vmem:[#allocation5 + $0x8] sm:$0xff]
    %v83 = vld [vmem:[#allocation7] sm:$0xff]
    %v84 = vld [vmem:[#allocation7 + $0x8] sm:$0xff]
    %v85 = vsub.f32 %v79, %v81
    %v86 = vsub.f32 %v80, %v82
    %v87 = vmul.f32 %v85, %v85
    %v88 = vmul.f32 %v86, %v86
    %v89 = vmul.f32 %v83, %v83
    %v90 = vmul.f32 %v84, %v84
    %v91 = vadd.f32 %v89, 0.1
    %v92 = vadd.f32 %v90, 0.1
    %v93 = vrcp.pop %v91
    %v94 = vmul.f32 %v87, %v93
    %v95 = vrcp.pop %v92
    %v96 = vmul.f32 %v88, %v95
    %v97 = vadd.f32 %v94, %v96
    %v98 = vld [vmem:[#allocation8] sm:$0xff]
    %v99 = vadd.f32 %v98, %v97
    %100 = vst [vmem:[#allocation8] sm:$0xff] %v99
    // Predicated region
    $region30: #{tpu_custom_call.1} parent=1 // pred_check
      _
    $region31: #{tpu_custom_call.1} parent=1 // pred_check_branch
      %102 = sbr.rel (0) target = $region33
    $region32: #{tpu_custom_call.1} parent=1 // pred_region
      %s104 = ssub.s32 128, 128
      %105 = vsyncadd [#allocation4], %s104
      %s107 = sshll.u32 [#allocation8], 4
      %s108 = int_to_ptr.vmem [resolvable:$true] %s107
      %110 = dma.vmem_to_hbm [thread:$0]  %s108, 128, %s3, [#allocation4]
    $region33: #{tpu_custom_call.1} parent=1 // pred_fallthru
      _
    // Predicated region
    $region34: #{tpu_custom_call.1} parent=1 // pred_check
      _
    $region35: #{tpu_custom_call.1} parent=1 // pred_check_branch
      %112 = sbr.rel (0) target = $region37
    $region36: #{tpu_custom_call.1} parent=1 // pred_region
      %113 = dma.done [#allocation4], 128
    $region37: #{tpu_custom_call.1} parent=1 // pred_fallthru
      _
    %114 = vsyncpa [#allocation3], 1
    %115 = vsyncpa [#allocation6], 1
    %116 = vsyncpa [#allocation4], 1

</llo_original>
